<compile_context>
chip_gen: v6e
topology: v6e:2x2x1
jax: 0.10.0
libtpu: 0.0.40
codegen_flags: <defaults>
</compile_context>

<pallas_src>
import functools

import jax
import jax.numpy as jnp
from jax.experimental import pallas as pl
from jax.experimental.pallas import tpu as pltpu

_EPS = 1e-5                      # nn.BatchNorm2d default eps
_LANES = 128


# ------------------------------ small helpers ------------------------------

def _round_up(x, d):
    return (x + d - 1) // d * d


def _pad_lanes(c):
    return _round_up(max(c, _LANES), _LANES)


def _device_budgets():
    """(vmem_limit_bytes, row-tile cap) per TPU generation; safe fallback."""
    vmem_phys = 0
    try:
        info = pltpu.get_tpu_info()
        for attr in ("vmem_capacity_bytes", "vmem_size_bytes", "vmem_bytes"):
            v = getattr(info, attr, None)
            if v:
                vmem_phys = int(v)
                break
    except Exception:
        vmem_phys = 0
    if vmem_phys >= (100 << 20):          # v5e / v6e: 128 MiB physical VMEM
        return 64 * 1024 * 1024, 1024
    return 40 * 1024 * 1024, 512          # v7x (64 MiB/TC) or unknown


def _pick_tile(m, cap):
    """Largest row tile <= cap dividing m (prefer >= 2 grid steps)."""
    cands = [t for t in (2048, 1024, 512, 256, 128, 64, 32, 16, 8) if t <= cap]
    for t in cands:
        if m % t == 0 and m // t >= 2:
            return t
    for t in cands:
        if m % t == 0:
            return t
    return m                              # full-extent block (always legal)


def _pick_row_tile(ho, wo, max_rows):
    """Largest divisor tr of ho with tr*wo <= max_rows (>=1)."""
    best = 1
    for t in range(1, ho + 1):
        if ho % t == 0 and t * wo <= max_rows:
            best = t
    return best


def _partial_stats(y):
    """Per-sublane partial sum / sum-of-squares of an (M, C) f32 block."""
    m, c = y.shape
    pad = (-m) % 8
    if pad:
        y = jnp.pad(y, ((0, pad), (0, 0)))
    yr = y.reshape(-1, 8, c)
    return jnp.sum(yr, axis=0), jnp.sum(yr * yr, axis=0)


# --------------------------- Pallas kernel bodies ---------------------------

def _mm_kernel(x_ref, sc_ref, bi_ref, w_ref, y_ref, st_ref, *, apply_act):
    """1x1-conv-as-matmul (+ optional fused BN+ReLU prologue) + BN partials."""
    x = x_ref[...]
    if apply_act:                                        # relu(x*scale + bias)
        x = jnp.maximum(x.astype(jnp.float32) * sc_ref[...] + bi_ref[...], 0.0)
    y = jnp.dot(x.astype(jnp.bfloat16), w_ref[...],
                preferred_element_type=jnp.float32)
    y_ref[...] = y.astype(y_ref.dtype)
    ps, pq = _partial_stats(y)
    st_ref[0, 0] = ps
    st_ref[0, 1] = pq


def _conv2_kernel(x_ref, sc_ref, bi_ref, w_ref, y_ref, st_ref, a_ref,
                  *, stride, h, w, ho, wo, tr):
    """3x3 conv with fused BN1+ReLU prologue; no HBM im2col / parity staging.

    x_ref  : stride==1 -> (1, h, w, C) raw conv1 output of one image
             stride==2 -> (1, ho, 2, wo, 2C) free parity view of the same
    a_ref  : VMEM scratch (s*s, PH, PW, C) bf16 holding the activated,
             zero-ring-padded parity planes of the current image.  Filled once
             per image (row-tile grid axis is "arbitrary", scratch persists).
    """
    s = stride
    c = w_ref.shape[1]
    cout = w_ref.shape[2]
    r = pl.program_id(1)

    @pl.when(r == 0)
    def _fill():                                         # once per image
        a_ref[...] = jnp.zeros(a_ref.shape, a_ref.dtype)
        sc = sc_ref[...].reshape(1, 1, c)
        bi = bi_ref[...].reshape(1, 1, c)
        if s == 1:
            act = jnp.maximum(x_ref[0].astype(jnp.float32) * sc + bi, 0.0)
            a_ref[0, 1:h + 1, 1:w + 1, :] = act.astype(a_ref.dtype)
        else:
            for py in range(2):
                for px in range(2):
                    src = x_ref[0, :, 1 - py, :, (1 - px) * c:(2 - px) * c]
                    act = jnp.maximum(src.astype(jnp.float32) * sc + bi, 0.0)
                    p = py * 2 + px
                    a_ref[p,
                          (1 - py):(1 - py) + ho,
                          (1 - px):(1 - px) + wo, :] = act.astype(a_ref.dtype)

    r0 = r * tr
    acc = jnp.zeros((tr * wo, cout), jnp.float32)
    for dy in range(3):                                  # 9 shifted taps
        for dx in range(3):
            if s == 1:
                tap = a_ref[0, pl.ds(r0 + dy, tr), dx:dx + wo, :]
            else:
                p = (dy % 2) * 2 + (dx % 2)
                tap = a_ref[p, pl.ds(r0 + dy // 2, tr),
                            (dx // 2):(dx // 2) + wo, :]
            acc += jnp.dot(tap.reshape(tr * wo, c), w_ref[dy * 3 + dx],
                           preferred_element_type=jnp.float32)

    y_ref[0] = acc.reshape(tr, wo, cout).astype(y_ref.dtype)
    ps, pq = _partial_stats(acc)
    st_ref[0, 0] = ps
    st_ref[0, 1] = pq


def _residual_kernel(yr_ref, ys_ref, sr_ref, br_ref, ss_ref, bs_ref, o_ref):
    c = o_ref.shape[1]
    yr = yr_ref[...][:, :c].astype(jnp.float32)
    ys = ys_ref[...][:, :c].astype(jnp.float32)
    res = yr * sr_ref[...] + br_ref[...]                 # BN3(conv3 out)
    sct = ys * ss_ref[...] + bs_ref[...]                 # BN(shortcut)
    o_ref[...] = jnp.maximum(res + sct, 0.0).astype(o_ref.dtype)


# ----------------------------- pallas_call wrappers --------------------------

def conv_mm(x2d, w2d, sc, bi, *, apply_act, out_dtype, tile_cap, vmem_limit):
    m, k = x2d.shape
    cout = w2d.shape[1]
    tm = _pick_tile(m, tile_cap)
    gm = m // tm
    kern = functools.partial(_mm_kernel, apply_act=apply_act)
    return pl.pallas_call(
        kern,
        out_shape=(jax.ShapeDtypeStruct((m, cout), out_dtype),
                   jax.ShapeDtypeStruct((gm, 2, 8, cout), jnp.float32)),
        grid=(gm,),
        in_specs=[
            pl.BlockSpec((tm, k), lambda i: (i, 0)),
            pl.BlockSpec((1, k), lambda i: (0, 0)),
            pl.BlockSpec((1, k), lambda i: (0, 0)),
            pl.BlockSpec((k, cout), lambda i: (0, 0)),
        ],
        out_specs=(pl.BlockSpec((tm, cout), lambda i: (i, 0)),
                   pl.BlockSpec((1, 2, 8, cout), lambda i: (i, 0, 0, 0))),
        compiler_params=pltpu.CompilerParams(
            dimension_semantics=("parallel",),
            vmem_limit_bytes=vmem_limit),
    )(x2d, sc, bi, w2d)


def conv2_3x3(y1_in, sc1, bi1, w2taps, *, stride, h, w, ho, wo, cmid,
              out_dtype, tile_cap, vmem_limit):
    s = stride
    n = y1_in.shape[0]
    tr = _pick_row_tile(ho, wo, tile_cap)
    nrt = ho // tr
    if s == 1:
        in_spec = pl.BlockSpec((1, h, w, cmid), lambda b, r: (b, 0, 0, 0))
        ph, pw = h + 2, w + 2
    else:
        in_spec = pl.BlockSpec((1, ho, 2, wo, 2 * cmid),
                               lambda b, r: (b, 0, 0, 0, 0))
        ph, pw = ho + 1, wo + 1
    kern = functools.partial(_conv2_kernel, stride=s, h=h, w=w, ho=ho, wo=wo,
                             tr=tr)
    return pl.pallas_call(
        kern,
        out_shape=(jax.ShapeDtypeStruct((n, ho, wo, cmid), out_dtype),
                   jax.ShapeDtypeStruct((n * nrt, 2, 8, cmid), jnp.float32)),
        grid=(n, nrt),
        in_specs=[
            in_spec,
            pl.BlockSpec((1, cmid), lambda b, r: (0, 0)),
            pl.BlockSpec((1, cmid), lambda b, r: (0, 0)),
            pl.BlockSpec((9, cmid, cmid), lambda b, r: (0, 0, 0)),
        ],
        out_specs=(pl.BlockSpec((1, tr, wo, cmid), lambda b, r: (b, r, 0, 0)),
                   pl.BlockSpec((1, 2, 8, cmid),
                                lambda b, r: (b * nrt + r, 0, 0, 0))),
        scratch_shapes=[pltpu.VMEM((s * s, ph, pw, cmid), jnp.bfloat16)],
        compiler_params=pltpu.CompilerParams(
            # batch axis megacore-parallel; row-tile axis stays "arbitrary" so
            # the per-image VMEM plane scratch filled at r==0 can be reused.
            dimension_semantics=("parallel", "arbitrary"),
            vmem_limit_bytes=vmem_limit),
    )(y1_in, sc1, bi1, w2taps)


def residual_add_relu(y_res, y_sc, s_res, b_res, s_sc, b_sc, *, out_c,
                      tile_cap, vmem_limit):
    m, cr = y_res.shape
    cs = y_sc.shape[1]
    tm = _pick_tile(m, tile_cap)
    row = lambda k: pl.BlockSpec((1, k), lambda i: (0, 0))
    return pl.pallas_call(
        _residual_kernel,
        out_shape=jax.ShapeDtypeStruct((m, out_c), jnp.bfloat16),
        grid=(m // tm,),
        in_specs=[pl.BlockSpec((tm, cr), lambda i: (i, 0)),
                  pl.BlockSpec((tm, cs), lambda i: (i, 0)),
                  row(out_c), row(out_c), row(out_c), row(out_c)],
        out_specs=pl.BlockSpec((tm, out_c), lambda i: (i, 0)),
        compiler_params=pltpu.CompilerParams(
            dimension_semantics=("parallel",),
            vmem_limit_bytes=vmem_limit),
    )(y_res, y_sc, s_res, b_res, s_sc, b_sc)


# ------------------------------ JAX-level glue ------------------------------

def _bn_fold(st, count, gamma_p, beta_p):
    """Reduce per-program/per-sublane partials; fold into scale/bias."""
    tot = jnp.sum(st, axis=(0, 2))                  # (2, C)
    mean = tot[0] / count
    var = tot[1] / count - mean * mean              # biased variance
    rstd = jax.lax.rsqrt(var + _EPS)
    scale = gamma_p * rstd
    bias = beta_p - mean * scale
    return scale[None, :], bias[None, :]


def _pad_vec(v, c):
    return jnp.pad(v, (0, c - v.shape[0]))


def _pad_mat(w, k, c):
    return jnp.pad(w, ((0, k - w.shape[0]), (0, c - w.shape[1])))


def init_params(key, in_channels, middle_channels, stride):
    """Deterministic synthetic parameters; BN affine uses PyTorch defaults."""
    out_channels = middle_channels * 4
    k1, k2, k3, k4 = jax.random.split(key, 4)
    p = {
        "w1": 0.1 * jax.random.normal(k1, (middle_channels, in_channels, 1, 1), jnp.float32),
        "g1": jnp.ones((middle_channels,), jnp.float32),
        "b1": jnp.zeros((middle_channels,), jnp.float32),
        "w2": 0.1 * jax.random.normal(k2, (middle_channels, middle_channels, 3, 3), jnp.float32),
        "g2": jnp.ones((middle_channels,), jnp.float32),
        "b2": jnp.zeros((middle_channels,), jnp.float32),
        "w3": 0.1 * jax.random.normal(k3, (middle_channels * 4, middle_channels, 1, 1), jnp.float32),
        "g3": jnp.ones((out_channels,), jnp.float32),
        "b3": jnp.zeros((out_channels,), jnp.float32),
    }
    if stride != 1 or in_channels != out_channels:
        p["ws"] = 0.1 * jax.random.normal(k4, (out_channels, in_channels, 1, 1), jnp.float32)
        p["gs"] = jnp.ones((out_channels,), jnp.float32)
        p["bs"] = jnp.zeros((out_channels,), jnp.float32)
    return p


def bottleneck_forward(params, x_nchw, *, middle_channels, stride):
    assert stride in (1, 2)
    out_c = middle_channels * 4
    n, cin, h, w = x_nchw.shape
    s = stride
    if s == 2:
        assert h % 2 == 0 and w % 2 == 0
    ho = (h - 1) // s + 1
    wo = (w - 1) // s + 1
    m1 = n * h * w
    m2 = n * ho * wo

    midp = _pad_lanes(middle_channels)          # matmul N dims pad to 128
    outp = _pad_lanes(out_c)
    vmem_limit, tile_cap = _device_budgets()

    # channels-last, bf16 module input; K dims are never padded.
    x_nhwc = jnp.transpose(x_nchw, (0, 2, 3, 1)).astype(jnp.bfloat16)
    zk = lambda k: jnp.zeros((1, k), jnp.float32)

    # --- conv1 (1x1, no bias) + BN1 batch-statistic partials ----------------
    # TODO(synk): fuse the projection-shortcut 1x1 matmul into this call for
    # stride==1 projection blocks (shares the x read); not exercised here.
    x1 = x_nhwc.reshape(m1, cin)
    w1 = _pad_mat(jnp.transpose(params["w1"][:, :, 0, 0]), cin, midp).astype(jnp.bfloat16)
    y1, st1 = conv_mm(x1, w1, zk(cin), zk(cin), apply_act=False,
                      out_dtype=jnp.bfloat16, tile_cap=tile_cap,
                      vmem_limit=vmem_limit)
    sc1, bi1 = _bn_fold(st1, m1, _pad_vec(params["g1"], midp),
                        _pad_vec(params["b1"], midp))

    # --- conv2 (3x3, stride, pad=1): BN1+ReLU fused in-kernel, no staging ---
    y1_img = y1.reshape(n, h, w, midp)
    y1_in = y1_img if s == 1 else y1_img.reshape(n, ho, 2, wo, 2 * midp)  # free view
    w2 = jnp.transpose(params["w2"], (2, 3, 1, 0)).reshape(
        9, middle_channels, middle_channels)
    w2 = jnp.pad(w2, ((0, 0), (0, midp - middle_channels),
                      (0, midp - middle_channels))).astype(jnp.bfloat16)
    y2_img, st2 = conv2_3x3(y1_in, sc1, bi1, w2, stride=s, h=h, w=w, ho=ho,
                            wo=wo, cmid=midp, out_dtype=jnp.bfloat16,
                            tile_cap=tile_cap, vmem_limit=vmem_limit)
    sc2, bi2 = _bn_fold(st2, m2, _pad_vec(params["g2"], midp),
                        _pad_vec(params["b2"], midp))
    y2 = y2_img.reshape(m2, midp)

    # --- conv3 (1x1): BN2+ReLU fused as the matmul prologue -----------------
    w3 = _pad_mat(jnp.transpose(params["w3"][:, :, 0, 0]), midp, outp).astype(jnp.bfloat16)
    y3, st3 = conv_mm(y2, w3, sc2, bi2, apply_act=True,
                      out_dtype=jnp.bfloat16, tile_cap=tile_cap,
                      vmem_limit=vmem_limit)
    sc3, bi3 = _bn_fold(st3, m2, _pad_vec(params["g3"], outp),
                        _pad_vec(params["b3"], outp))

    # --- shortcut: 1x1 strided conv + BN, or identity ------------------------
    if "ws" in params:
        xs_src = x_nhwc if s == 1 else x_nhwc[:, ::s, ::s, :]
        xs = xs_src.reshape(m2, cin)
        ws = _pad_mat(jnp.transpose(params["ws"][:, :, 0, 0]), cin, outp).astype(jnp.bfloat16)
        ys, sts = conv_mm(xs, ws, zk(cin), zk(cin), apply_act=False,
                          out_dtype=jnp.bfloat16, tile_cap=tile_cap,
                          vmem_limit=vmem_limit)
        scs, bis = _bn_fold(sts, m2, _pad_vec(params["gs"], outp),
                            _pad_vec(params["bs"], outp))
        scs, bis = scs[:, :out_c], bis[:, :out_c]
    else:
        assert s == 1 and cin == out_c
        ys = x_nhwc.reshape(m2, out_c)              # identity path, bf16
        scs = jnp.ones((1, out_c), jnp.float32)
        bis = jnp.zeros((1, out_c), jnp.float32)

    # --- fused BN3(residual) + BN(shortcut) + add + ReLU ---------------------
    out2d = residual_add_relu(y3, ys, sc3[:, :out_c], bi3[:, :out_c], scs, bis,
                              out_c=out_c, tile_cap=tile_cap,
                              vmem_limit=vmem_limit)
    out = out2d.reshape(n, ho, wo, out_c)
    return jnp.transpose(out, (0, 3, 1, 2)).astype(jnp.float32)


# --------------------- pure-JAX reference (for checking) ---------------------

def bottleneck_reference(params, x_nchw, *, stride):
    def conv(x, w, s, p):
        return jax.lax.conv_general_dilated(
            x, w, (s, s), [(p, p), (p, p)],
            dimension_numbers=("NCHW", "OIHW", "NCHW"))

    def bn(x, gamma, beta):
        mean = jnp.mean(x, axis=(0, 2, 3), keepdims=True)
        var = jnp.mean(jnp.square(x - mean), axis=(0, 2, 3), keepdims=True)
        xh = (x - mean) * jax.lax.rsqrt(var + _EPS)
        return xh * gamma[None, :, None, None] + beta[None, :, None, None]

    r = jax.nn.relu(bn(conv(x_nchw, params["w1"], 1, 0), params["g1"], params["b1"]))
    r = jax.nn.relu(bn(conv(r, params["w2"], stride, 1), params["g2"], params["b2"]))
    r = bn(conv(r, params["w3"], 1, 0), params["g3"], params["b3"])
    if "ws" in params:
        sh = bn(conv(x_nchw, params["ws"], stride, 0), params["gs"], params["bs"])
    else:
        sh = x_nchw
    return jax.nn.relu(r + sh)


def _close(out, ref, atol=5e-2, rtol=5e-2):
    # bf16 matmul operands / bf16 activation streams (f32 accumulation) loosen
    # the tolerance vs the f32 reference; BN renormalization keeps the error
    # comfortably inside these bounds.
    err = jnp.abs(out - ref) - rtol * jnp.abs(ref)
    return float(jnp.max(err)) < atol


if __name__ == "__main__":
    key = jax.random.PRNGKey(0)
    kx1, kp1, kx2, kp2 = jax.random.split(key, 4)

    # Case 1: projection shortcut (stride=2, channel expansion 4 -> 32).
    in_c, mid_c, stride = 4, 8, 2
    x = jax.random.normal(kx1, (2, in_c, 16, 16), jnp.float32)
    params = init_params(kp1, in_c, mid_c, stride)
    out = jax.block_until_ready(
        bottleneck_forward(params, x, middle_channels=mid_c, stride=stride))
    ref = bottleneck_reference(params, x, stride=stride)
    assert out.shape == (2, mid_c * 4, 8, 8), out.shape
    assert _close(out, ref)

    # Case 2: identity shortcut (stride=1, in_channels == 4 * middle_channels).
    in_c2, mid_c2 = 32, 8
    x2 = jax.random.normal(kx2, (2, in_c2, 16, 16), jnp.float32)
    params2 = init_params(kp2, in_c2, mid_c2, 1)
    out2 = jax.block_until_ready(
        bottleneck_forward(params2, x2, middle_channels=mid_c2, stride=1))
    ref2 = bottleneck_reference(params2, x2, stride=1)
    assert out2.shape == (2, 32, 16, 16), out2.shape
    assert _close(out2, ref2)

    # TODO(synk): BatchNorm2d running-mean/var buffer updates (a training-time
    # side effect that does not change the forward output) are not modeled.
    print("KERNEL_OK")
</pallas_src>

<mosaic_0001>
module attributes {stable_mosaic.version = 11 : i64} {
  func.func @_mm_kernel(%arg0: i32, %arg1: memref<256x4xbf16, #tpu.memory_space<vmem>>, %arg2: memref<1x4xf32, #tpu.memory_space<vmem>>, %arg3: memref<1x4xf32, #tpu.memory_space<vmem>>, %arg4: memref<4x128xbf16, #tpu.memory_space<vmem>>, %arg5: memref<256x128xbf16, #tpu.memory_space<vmem>>, %arg6: memref<1x2x8x128xf32, #tpu.memory_space<vmem>>) attributes {dimension_semantics = [#tpu.dimension_semantics<parallel>], iteration_bounds = array<i64: 2>, scalar_prefetch = 0 : i64, scratch_operands = 0 : i64, tpu.core_type = #tpu.core_type<tc>, window_params = [{transform_indices = @transform_0, window_bounds = array<i64: 256, 4>}, {pipeline_mode = #tpu.pipeline_mode<synchronous>, transform_indices = @transform_1, window_bounds = array<i64: 1, 4>}, {pipeline_mode = #tpu.pipeline_mode<synchronous>, transform_indices = @transform_2, window_bounds = array<i64: 1, 4>}, {pipeline_mode = #tpu.pipeline_mode<synchronous>, transform_indices = @transform_3, window_bounds = array<i64: 4, 128>}, {transform_indices = @transform_4, window_bounds = array<i64: 256, 128>}, {transform_indices = @transform_5, window_bounds = array<i64: 1, 2, 8, 128>}]} {
    %c0 = arith.constant 0 : index
    %c0_0 = arith.constant 0 : index
    %0 = vector.load %arg1[%c0, %c0_0] : memref<256x4xbf16, #tpu.memory_space<vmem>>, vector<256x4xbf16>
    %c0_1 = arith.constant 0 : index
    %c0_2 = arith.constant 0 : index
    %1 = vector.load %arg4[%c0_1, %c0_2] : memref<4x128xbf16, #tpu.memory_space<vmem>>, vector<4x128xbf16>
    %cst = arith.constant dense<0.000000e+00> : vector<256x128xf32>
    %2 = tpu.matmul %0, %1, %cst {dimension_numbers = #tpu.dot_dimension_numbers<[1], [0], [0], [1], [0, 0, 1, 1], [], []>} : vector<256x4xbf16>, vector<4x128xbf16>, vector<256x128xf32> -> vector<256x128xf32>
    %3 = arith.truncf %2 : vector<256x128xf32> to vector<256x128xbf16>
    %c0_3 = arith.constant 0 : index
    %c0_4 = arith.constant 0 : index
    %4 = vector.load %arg5[%c0_3, %c0_4] : memref<256x128xbf16, #tpu.memory_space<vmem>>, vector<256x128xbf16>
    tpu.vector_store %arg5[%c0_3, %c0_4], %3 {strides = array<i32>} : memref<256x128xbf16, #tpu.memory_space<vmem>>, vector<256x128xbf16>,
    %5 = vector.shape_cast %2 : vector<256x128xf32> to vector<32x8x128xf32>
    %cst_5 = arith.constant dense<0.000000e+00> : vector<8x128xf32>
    %6 = vector.multi_reduction <add>, %5, %cst_5 [0] : vector<32x8x128xf32> to vector<8x128xf32>
    %7 = arith.mulf %5, %5 : vector<32x8x128xf32>
    %cst_6 = arith.constant dense<0.000000e+00> : vector<8x128xf32>
    %8 = vector.multi_reduction <add>, %7, %cst_6 [0] : vector<32x8x128xf32> to vector<8x128xf32>
    %c0_7 = arith.constant 0 : index
    %c0_8 = arith.constant 0 : index
    %c0_9 = arith.constant 0 : index
    %c0_10 = arith.constant 0 : index
    %9 = vector.load %arg6[%c0_7, %c0_8, %c0_9, %c0_10] : memref<1x2x8x128xf32, #tpu.memory_space<vmem>>, vector<1x1x8x128xf32>
    %10 = vector.shape_cast %9 : vector<1x1x8x128xf32> to vector<8x128xf32>
    %11 = vector.shape_cast %6 : vector<8x128xf32> to vector<1x1x8x128xf32>
    tpu.vector_store %arg6[%c0_7, %c0_8, %c0_9, %c0_10], %11 {strides = array<i32>} : memref<1x2x8x128xf32, #tpu.memory_space<vmem>>, vector<1x1x8x128xf32>,
    %c0_11 = arith.constant 0 : index
    %c1 = arith.constant 1 : index
    %c0_12 = arith.constant 0 : index
    %c0_13 = arith.constant 0 : index
    %12 = vector.load %arg6[%c0_11, %c1, %c0_12, %c0_13] : memref<1x2x8x128xf32, #tpu.memory_space<vmem>>, vector<1x1x8x128xf32>
    %13 = vector.shape_cast %12 : vector<1x1x8x128xf32> to vector<8x128xf32>
    %14 = vector.shape_cast %8 : vector<8x128xf32> to vector<1x1x8x128xf32>
    tpu.vector_store %arg6[%c0_11, %c1, %c0_12, %c0_13], %14 {strides = array<i32>} : memref<1x2x8x128xf32, #tpu.memory_space<vmem>>, vector<1x1x8x128xf32>,
    return
  }
  func.func @transform_0(%arg0: i32) -> (i32, i32) {
    %c0_i32 = arith.constant 0 : i32
    %c0_i32_0 = arith.constant 0 : i32
    return %arg0, %c0_i32 : i32, i32
  }
  func.func @transform_1(%arg0: i32) -> (i32, i32) {
    %c0_i32 = arith.constant 0 : i32
    %c0_i32_0 = arith.constant 0 : i32
    %c0_i32_1 = arith.constant 0 : i32
    return %c0_i32, %c0_i32_0 : i32, i32
  }
  func.func @transform_2(%arg0: i32) -> (i32, i32) {
    %c0_i32 = arith.constant 0 : i32
    %c0_i32_0 = arith.constant 0 : i32
    %c0_i32_1 = arith.constant 0 : i32
    return %c0_i32, %c0_i32_0 : i32, i32
  }
  func.func @transform_3(%arg0: i32) -> (i32, i32) {
    %c0_i32 = arith.constant 0 : i32
    %c0_i32_0 = arith.constant 0 : i32
    %c0_i32_1 = arith.constant 0 : i32
    return %c0_i32, %c0_i32_0 : i32, i32
  }
  func.func @transform_4(%arg0: i32) -> (i32, i32) {
    %c0_i32 = arith.constant 0 : i32
    %c0_i32_0 = arith.constant 0 : i32
    return %arg0, %c0_i32 : i32, i32
  }
  func.func @transform_5(%arg0: i32) -> (i32, i32, i32, i32) {
    %c0_i32 = arith.constant 0 : i32
    %c0_i32_0 = arith.constant 0 : i32
    %c0_i32_1 = arith.constant 0 : i32
    %c0_i32_2 = arith.constant 0 : i32
    return %arg0, %c0_i32, %c0_i32_0, %c0_i32_1 : i32, i32, i32, i32
  }
}

</mosaic_0001>

<llo_original>
// kernel: tpu_custom_call.1
$region0: #{tpu_custom_call.1}
  #allocation0 [shape = 'u32[]', space=smem, size = 0x4, offset = 0x4, fixed_abs, tag = 'smem constant byte address 0x4 - core index']
  #allocation1 [shape = 'u32[144,128]{1,0:T(1,128)}', space=vmem, size = 0x12000, scoped, tag = 'internal scratch']
  %s0 = inlined_call_operand.vmem [shape: bf16[512,4], index: 0, kind: input, shape index: {}]
  %s1 = inlined_call_operand.vmem [shape: f32[1,4], index: 1, kind: input, shape index: {}]
  %s2 = inlined_call_operand.vmem [shape: f32[1,4], index: 2, kind: input, shape index: {}]
  %s3 = inlined_call_operand.vmem [shape: bf16[4,128], index: 3, kind: input, shape index: {}]
  %s4 = inlined_call_operand.hbm [shape: bf16[512,128], index: 4, kind: output, shape index: {0}]
  %s5 = inlined_call_operand.hbm [shape: f32[2,2,8,128], index: 5, kind: output, shape index: {1}]
  %6 = xla_tuple %s4, %s5
  %s7 = sld [smem:[#allocation0]]
  $region57: #{tpu_custom_call.1} parent=0
    _
  %s9 = ssub.s32 1, %s7
  %s10 = scalar_select 0, %s9, %s7
  $region1: #{tpu_custom_call.1} parent=0
    #allocation2 [shape = 'u8[131072]{0}', space=vmem, size = 0x20000, scoped, tag = 'output window, operand 0']
    #allocation3 [shape = 's32[2]{0}', space=sflag, size = 0x8, scoped, tag = 'scoped memory for tpu_custom_call.1']
    #allocation4 [shape = 'u8[16384]{0}', space=vmem, size = 0x4000, scoped, tag = 'output window, operand 1']
    #allocation5 [shape = 's32[2]{0}', space=sflag, size = 0x8, scoped, tag = 'scoped memory for tpu_custom_call.1']
    %11 = vsyncpa [#allocation3], 0
    %s12 = scalar_lea.sflag [#allocation3], 1
    %13 = vsyncpa %s12, 0
    %14 = vsyncpa [#allocation5], 0
    %s15 = scalar_lea.sflag [#allocation5], 1
    %16 = vsyncpa %s15, 0
    loop: start=0, step=1, limit=4
    $region2: #{tpu_custom_call.1} parent=1 // loop_pre_header
      _
    $region3: #{tpu_custom_call.1} parent=1 // loop_header
      %s18 = sphi 0, %s22
      %p19 = scmp.ge.s32.totalorder %s18, 4
      %s28 = sphi 0, %s30
      %s31 = sphi 0, %s28
      %s32 = sphi 0, %s31
      %s48 = sphi 0, %s32
      %s52 = sphi 0, %s52
      %s54 = sphi 0, %s52
      %s55 = sphi 0, %s54
      %s69 = sphi 0, %s55
      %s73 = sphi 0, %s73
      %s75 = sphi 0, %s73
      %s76 = sphi 0, %s75
      %s90 = sphi 0, %s76
      %s94 = sphi 0, %s94
      %s96 = sphi 0, %s94
      %s97 = sphi 0, %s96
      %s111 = sphi 0, %s97
      %s117 = sphi 0, %s119
      %s120 = sphi 0, %s117
      %s121 = sphi 0, %s120
      %s137 = sphi 0, %s121
      %s143 = sphi 0, %s145
      %s146 = sphi 0, %s143
      %s147 = sphi 0, %s146
      %s163 = sphi 0, %s147
    $region4: #{tpu_custom_call.1} parent=1 // loop_header_branch
      %21 = sbr.rel (%p19) target = $region8
    $region5: #{tpu_custom_call.1} parent=1 // loop_body
      %s23 = ssub.s32 %s18, 1
      %s24 = ssub.s32 %s18, 2
      %s25 = sadd.s32 %s18, 1
      %s26 = ssub.s32 %s18, %s25
      %p27 = scmp.eq.s32.totalorder %s26, 0
      %s29 = sadd.s32 %s28, 1
      %s30 = scalar_select %p27, %s28, %s29
      %p33 = pneg %p27
      %p34 = scmp.eq.s32.totalorder %s18, 1
      %p35 = por %p33, %p34
      %p36 = scmp.ne.s32.totalorder %s28, %s31
      %p37 = scmp.eq.s32.totalorder %s18, 0
      %p38 = por %p36, %p37
      %p39 = scmp.ne.s32.totalorder %s28, %s31
      %p40 = scmp.eq.s32.totalorder %s23, 1
      %p41 = por %p39, %p40
      %p42 = scmp.ne.s32.totalorder %s31, %s32
      %p43 = scmp.eq.s32.totalorder %s23, 0
      %p44 = por %p42, %p43
      %p45 = scmp.ne.s32.totalorder %s31, %s32
      %p46 = scmp.eq.s32.totalorder %s24, 1
      %p47 = por %p45, %p46
      %p49 = scmp.ne.s32.totalorder %s32, %s48
      %p50 = scmp.eq.s32.totalorder %s24, 0
      %p51 = por %p49, %p50
      %s53 = sadd.s32 %s52, 1
      %p56 = scmp.eq.s32.totalorder %s18, 1
      %p57 = scmp.ne.s32.totalorder %s52, %s54
      %p58 = scmp.eq.s32.totalorder %s18, 0
      %p59 = por %p57, %p58
      %p60 = scmp.ne.s32.totalorder %s52, %s54
      %p61 = scmp.eq.s32.totalorder %s23, 1
      %p62 = por %p60, %p61
      %p63 = scmp.ne.s32.totalorder %s54, %s55
      %p64 = scmp.eq.s32.totalorder %s23, 0
      %p65 = por %p63, %p64
      %p66 = scmp.ne.s32.totalorder %s54, %s55
      %p67 = scmp.eq.s32.totalorder %s24, 1
      %p68 = por %p66, %p67
      %p70 = scmp.ne.s32.totalorder %s55, %s69
      %p71 = scmp.eq.s32.totalorder %s24, 0
      %p72 = por %p70, %p71
      %s74 = sadd.s32 %s73, 1
      %p77 = scmp.eq.s32.totalorder %s18, 1
      %p78 = scmp.ne.s32.totalorder %s73, %s75
      %p79 = scmp.eq.s32.totalorder %s18, 0
      %p80 = por %p78, %p79
      %p81 = scmp.ne.s32.totalorder %s73, %s75
      %p82 = scmp.eq.s32.totalorder %s23, 1
      %p83 = por %p81, %p82
      %p84 = scmp.ne.s32.totalorder %s75, %s76
      %p85 = scmp.eq.s32.totalorder %s23, 0
      %p86 = por %p84, %p85
      %p87 = scmp.ne.s32.totalorder %s75, %s76
      %p88 = scmp.eq.s32.totalorder %s24, 1
      %p89 = por %p87, %p88
      %p91 = scmp.ne.s32.totalorder %s76, %s90
      %p92 = scmp.eq.s32.totalorder %s24, 0
      %p93 = por %p91, %p92
      %s95 = sadd.s32 %s94, 1
      %p98 = scmp.eq.s32.totalorder %s18, 1
      %p99 = scmp.ne.s32.totalorder %s94, %s96
      %p100 = scmp.eq.s32.totalorder %s18, 0
      %p101 = por %p99, %p100
      %p102 = scmp.ne.s32.totalorder %s94, %s96
      %p103 = scmp.eq.s32.totalorder %s23, 1
      %p104 = por %p102, %p103
      %p105 = scmp.ne.s32.totalorder %s96, %s97
      %p106 = scmp.eq.s32.totalorder %s23, 0
      %p107 = por %p105, %p106
      %p108 = scmp.ne.s32.totalorder %s96, %s97
      %p109 = scmp.eq.s32.totalorder %s24, 1
      %p110 = por %p108, %p109
      %p112 = scmp.ne.s32.totalorder %s97, %s111
      %p113 = scmp.eq.s32.totalorder %s24, 0
      %p114 = por %p112, %p113
      %s115 = ssub.s32 %s18, %s25
      %p116 = scmp.eq.s32.totalorder %s115, 0
      %s118 = sadd.s32 %s117, 1
      %s119 = scalar_select %p116, %s117, %s118
      %p122 = pneg %p116
      %p123 = scmp.eq.s32.totalorder %s18, 1
      %p124 = por %p122, %p123
      %p125 = scmp.ne.s32.totalorder %s117, %s120
      %p126 = scmp.eq.s32.totalorder %s18, 0
      %p127 = por %p125, %p126
      %p128 = scmp.ne.s32.totalorder %s117, %s120
      %p129 = scmp.eq.s32.totalorder %s23, 1
      %p130 = por %p128, %p129
      %p131 = scmp.ne.s32.totalorder %s120, %s121
      %p132 = scmp.eq.s32.totalorder %s23, 0
      %p133 = por %p131, %p132
      %p134 = scmp.ne.s32.totalorder %s120, %s121
      %p135 = scmp.eq.s32.totalorder %s24, 1
      %p136 = por %p134, %p135
      %p138 = scmp.ne.s32.totalorder %s121, %s137
      %p139 = scmp.eq.s32.totalorder %s24, 0
      %p140 = por %p138, %p139
      %s141 = ssub.s32 %s18, %s25
      %p142 = scmp.eq.s32.totalorder %s141, 0
      %s144 = sadd.s32 %s143, 1
      %s145 = scalar_select %p142, %s143, %s144
      %p148 = pneg %p142
      %p149 = scmp.eq.s32.totalorder %s18, 1
      %p150 = por %p148, %p149
      %p151 = scmp.ne.s32.totalorder %s143, %s146
      %p152 = scmp.eq.s32.totalorder %s18, 0
      %p153 = por %p151, %p152
      %p154 = scmp.ne.s32.totalorder %s143, %s146
      %p155 = scmp.eq.s32.totalorder %s23, 1
      %p156 = por %p154, %p155
      %p157 = scmp.ne.s32.totalorder %s146, %s147
      %p158 = scmp.eq.s32.totalorder %s23, 0
      %p159 = por %p157, %p158
      %p160 = scmp.ne.s32.totalorder %s146, %s147
      %p161 = scmp.eq.s32.totalorder %s24, 1
      %p162 = por %p160, %p161
      %p164 = scmp.ne.s32.totalorder %s147, %s163
      %p165 = scmp.eq.s32.totalorder %s24, 0
      %p166 = por %p164, %p165
      %p167 = scmp.le.s32.totalorder 1, %s18
      %p168 = scmp.lt.s32.totalorder %s18, 3
      %p169 = pnand %p167, %p168
      %p170 = pneg %p169
      // Predicated region
      $region9: #{tpu_custom_call.1} parent=5 // pred_check
        _
      $region10: #{tpu_custom_call.1} parent=5 // pred_check_branch
        %172 = sbr.rel (%p169) target = $region12
      $region11: #{tpu_custom_call.1} parent=5 // pred_region
        %s173 = ssub.s32 %s18, 1
        // Predicated region
        $region13: #{tpu_custom_call.1} parent=11 // pred_check
          %p174 = pneg %p65
        $region14: #{tpu_custom_call.1} parent=11 // pred_check_branch
          %176 = sbr.rel (%p174) target = $region16
        $region15: #{tpu_custom_call.1} parent=11 // pred_region
          _
        $region16: #{tpu_custom_call.1} parent=11 // pred_fallthru
          _
        // Predicated region
        $region17: #{tpu_custom_call.1} parent=11 // pred_check
          %p177 = pneg %p86
        $region18: #{tpu_custom_call.1} parent=11 // pred_check_branch
          %179 = sbr.rel (%p177) target = $region20
        $region19: #{tpu_custom_call.1} parent=11 // pred_region
          _
        $region20: #{tpu_custom_call.1} parent=11 // pred_fallthru
          _
        // Predicated region
        $region21: #{tpu_custom_call.1} parent=11 // pred_check
          %p180 = pneg %p107
        $region22: #{tpu_custom_call.1} parent=11 // pred_check_branch
          %182 = sbr.rel (%p180) target = $region24
        $region23: #{tpu_custom_call.1} parent=11 // pred_region
          _
        $region24: #{tpu_custom_call.1} parent=11 // pred_fallthru
          _
      $region12: #{tpu_custom_call.1} parent=5 // pred_fallthru
        _
      %p183 = scmp.lt.s32.totalorder %s18, 2
      // Predicated region
      $region25: #{tpu_custom_call.1} parent=5 // pred_check
        %p184 = pneg %p183
      $region26: #{tpu_custom_call.1} parent=5 // pred_check_branch
        %186 = sbr.rel (%p184) target = $region28
      $region27: #{tpu_custom_call.1} parent=5 // pred_region
        // Predicated region
        $region29: #{tpu_custom_call.1} parent=27 // pred_check
          %p187 = pneg %p38
        $region30: #{tpu_custom_call.1} parent=27 // pred_check_branch
          %189 = sbr.rel (%p187) target = $region32
        $region31: #{tpu_custom_call.1} parent=27 // pred_region
          %s190 = smul.u32 32, %s18
          %p191 = scmp.lt.s32.totalorder %s190, 63
          %s192 = scalar_select %p191, %s190, 63
          %s193 = smul.addr %s192, 4
          %s194 = scalar_lea.vmem %s0, %s193
          %s195 = smul.u32 32, %s18
        $region32: #{tpu_custom_call.1} parent=27 // pred_fallthru
          _
      $region28: #{tpu_custom_call.1} parent=5 // pred_fallthru
        _
      %p196 = scmp.le.s32.totalorder 1, %s18
      %p197 = scmp.lt.s32.totalorder %s18, 3
      %p198 = pnand %p196, %p197
      %p199 = pneg %p198
      // Predicated region
      $region33: #{tpu_custom_call.1} parent=5 // pred_check
        _
      $region34: #{tpu_custom_call.1} parent=5 // pred_check_branch
        %201 = sbr.rel (%p198) target = $region36
      $region35: #{tpu_custom_call.1} parent=5 // pred_region
        %s202 = ssub.s32 %s18, 1
        %s203 = smul.u32 32, %s23
        %p204 = scmp.lt.s32.totalorder %s203, 63
        %s205 = scalar_select %p204, %s203, 63
        %s206 = smul.addr %s205, 4
        %s207 = scalar_lea.vmem %s0, %s206
        %p208 = pneg %p44
        %p209 = pneg %p41
        %p210 = pneg %p65
        %p211 = pneg %p62
        %p212 = pneg %p86
        %p213 = pneg %p83
        %p214 = pneg %p107
        %p215 = pneg %p104
        %p216 = pneg %p133
        %p217 = pneg %p130
        %s218 = sand.u32 %s120, 1
        %s219 = scalar_lea.sflag [#allocation3], %s218
        %s220 = sand.u32 %s120, 1
        %s221 = smul.addr %s220, 128
        %s222 = scalar_lea.vmem [#allocation2], %s221
        %p223 = pneg %p159
        %p224 = pneg %p156
        %s225 = sand.u32 %s146, 1
        %s226 = scalar_lea.sflag [#allocation5], %s225
        %s227 = sand.u32 %s146, 1
        %s228 = smul.addr %s227, 16
        %s229 = scalar_lea.vmem [#allocation4], %s228
        %s230 = smul.u32 32, %s23
        %p231 = scmp.lt.s32.totalorder %s230, 63
        %s232 = scalar_select %p231, %s230, 63
        %s233 = smul.addr %s232, 4
        %s234 = scalar_lea.vmem %s0, %s233
        %s235 = smul.u32 32, %s23
        %s236 = smul.u32 32, %s23
        %v238 = vld [vmem:[%s234] sm:$0xf]
        %v239 = vld [vmem:[%s234 + $0x4] sm:$0xf]
        %v240 = vld [vmem:[%s234 + $0x8] sm:$0xf]
        %v241 = vld [vmem:[%s234 + $0xc] sm:$0xf]
        %v242 = vld [vmem:[%s234 + $0x10] sm:$0xf]
        %v243 = vld [vmem:[%s234 + $0x14] sm:$0xf]
        %v244 = vld [vmem:[%s234 + $0x18] sm:$0xf]
        %v245 = vld [vmem:[%s234 + $0x1c] sm:$0xf]
        %v246 = vld [vmem:[%s234 + $0x20] sm:$0xf]
        %v247 = vld [vmem:[%s234 + $0x24] sm:$0xf]
        %v248 = vld [vmem:[%s234 + $0x28] sm:$0xf]
        %v249 = vld [vmem:[%s234 + $0x2c] sm:$0xf]
        %v250 = vld [vmem:[%s234 + $0x30] sm:$0xf]
        %v251 = vld [vmem:[%s234 + $0x34] sm:$0xf]
        %v252 = vld [vmem:[%s234 + $0x38] sm:$0xf]
        %v253 = vld [vmem:[%s234 + $0x3c] sm:$0xf]
        %v254 = vld [vmem:[%s234 + $0x40] sm:$0xf]
        %v255 = vld [vmem:[%s234 + $0x44] sm:$0xf]
        %v256 = vld [vmem:[%s234 + $0x48] sm:$0xf]
        %v257 = vld [vmem:[%s234 + $0x4c] sm:$0xf]
        %v258 = vld [vmem:[%s234 + $0x50] sm:$0xf]
        %v259 = vld [vmem:[%s234 + $0x54] sm:$0xf]
        %v260 = vld [vmem:[%s234 + $0x58] sm:$0xf]
        %v261 = vld [vmem:[%s234 + $0x5c] sm:$0xf]
        %v262 = vld [vmem:[%s234 + $0x60] sm:$0xf]
        %v263 = vld [vmem:[%s234 + $0x64] sm:$0xf]
        %v264 = vld [vmem:[%s234 + $0x68] sm:$0xf]
        %v265 = vld [vmem:[%s234 + $0x6c] sm:$0xf]
        %v266 = vld [vmem:[%s234 + $0x70] sm:$0xf]
        %v267 = vld [vmem:[%s234 + $0x74] sm:$0xf]
        %v268 = vld [vmem:[%s234 + $0x78] sm:$0xf]
        %v269 = vld [vmem:[%s234 + $0x7c] sm:$0xf]
        %v270 = vld [vmem:[%s3] sm:$0x3]
        %v303 = vunpack.c.l.b16 %v238
        %v304 = vunpack.c.l.b16 %v239
        %v305 = vunpack.c.l.b16 %v240
        %v306 = vunpack.c.l.b16 %v241
        %v307 = vunpack.c.l.b16 %v242
        %v308 = vunpack.c.l.b16 %v243
        %v309 = vunpack.c.l.b16 %v244
        %v310 = vunpack.c.l.b16 %v245
        %v311 = vunpack.c.l.b16 %v246
        %v312 = vunpack.c.l.b16 %v247
        %v313 = vunpack.c.l.b16 %v248
        %v314 = vunpack.c.l.b16 %v249
        %v315 = vunpack.c.l.b16 %v250
        %v316 = vunpack.c.l.b16 %v251
        %v317 = vunpack.c.l.b16 %v252
        %v318 = vunpack.c.l.b16 %v253
        %v319 = vunpack.c.l.b16 %v254
        %v320 = vunpack.c.l.b16 %v255
        %v321 = vunpack.c.l.b16 %v256
        %v322 = vunpack.c.l.b16 %v257
        %v323 = vunpack.c.l.b16 %v258
        %v324 = vunpack.c.l.b16 %v259
        %v325 = vunpack.c.l.b16 %v260
        %v326 = vunpack.c.l.b16 %v261
        %v327 = vunpack.c.l.b16 %v262
        %v328 = vunpack.c.l.b16 %v263
        %v329 = vunpack.c.l.b16 %v264
        %v330 = vunpack.c.l.b16 %v265
        %v331 = vunpack.c.l.b16 %v266
        %v332 = vunpack.c.l.b16 %v267
        %v333 = vunpack.c.l.b16 %v268
        %v334 = vunpack.c.l.b16 %v269
        %v335 = vpack.c.b16 %v304, %v303
        %v336 = vpack.c.b16 %v306, %v305
        %v337 = vpack.c.b16 %v308, %v307
        %v338 = vpack.c.b16 %v310, %v309
        %v339 = vpack.c.b16 %v312, %v311
        %v340 = vpack.c.b16 %v314, %v313
        %v341 = vpack.c.b16 %v316, %v315
        %v342 = vpack.c.b16 %v318, %v317
        %v343 = vpack.c.b16 %v320, %v319
        %v344 = vpack.c.b16 %v322, %v321
        %v345 = vpack.c.b16 %v324, %v323
        %v346 = vpack.c.b16 %v326, %v325
        %v347 = vpack.c.b16 %v328, %v327
        %v348 = vpack.c.b16 %v330, %v329
        %v349 = vpack.c.b16 %v332, %v331
        %v350 = vpack.c.b16 %v334, %v333
        %vm351 = vcmask 31744
        %v353 = vsel %vm351, %v335, 0
        %v356 = vsel %vm351, %v336, 0
        %v359 = vsel %vm351, %v337, 0
        %v362 = vsel %vm351, %v338, 0
        %v365 = vsel %vm351, %v339, 0
        %v368 = vsel %vm351, %v340, 0
        %v371 = vsel %vm351, %v341, 0
        %v374 = vsel %vm351, %v342, 0
        %v377 = vsel %vm351, %v343, 0
        %v380 = vsel %vm351, %v344, 0
        %v383 = vsel %vm351, %v345, 0
        %v386 = vsel %vm351, %v346, 0
        %v389 = vsel %vm351, %v347, 0
        %v392 = vsel %vm351, %v348, 0
        %v395 = vsel %vm351, %v349, 0
        %v398 = vsel %vm351, %v350, 0
        %vm400 = vcmask 1041408
        %v402 = vsel %vm400, %v270, 0
        %404 = vmatprep.subr.bf16.mxu0 0
        %405 = vmatpush1.bf16.msra.mxu0 0
        %406 = vmatprep.subr.bf16.mxu0 0
        %407 = vmatpush1.bf16.msra.mxu0 0
        %408 = vmatprep.subr.bf16.mxu0 0
        %409 = vmatpush1.bf16.msra.mxu0 0
        %410 = vmatprep.subr.bf16.mxu0 0
        %411 = vmatpush1.bf16.msra.mxu0 0
        %412 = vmatprep.subr.bf16.mxu0 0
        %413 = vmatpush1.bf16.msra.mxu0 0
        %414 = vmatprep.subr.bf16.mxu0 0
        %415 = vmatpush1.bf16.msra.mxu0 0
        %416 = vmatprep.subr.bf16.mxu0 0
        %417 = vmatpush1.bf16.msra.mxu0 0
        %418 = vmatprep.subr.bf16.mxu0 0
        %419 = vmatpush1.bf16.msra.mxu0 %v402
        %420 = vmatprep.subr.bf16.mxu0 0
        %421 = vmatpush2.bf16.msra.mxu0 0
        %422 = vmatprep.subr.bf16.mxu0 0
        %423 = vmatpush2.bf16.msra.mxu0 0
        %424 = vmatprep.subr.bf16.mxu0 0
        %425 = vmatpush2.bf16.msra.mxu0 0
        %426 = vmatprep.subr.bf16.mxu0 0
        %427 = vmatpush2.bf16.msra.mxu0 0
        %428 = vmatprep.subr.bf16.mxu0 0
        %429 = vmatpush2.bf16.msra.mxu0 0
        %430 = vmatprep.subr.bf16.mxu0 0
        %431 = vmatpush2.bf16.msra.mxu0 0
        %432 = vmatprep.subr.bf16.mxu0 0
        %433 = vmatpush2.bf16.msra.mxu0 0
        %434 = vmatprep.subr.bf16.mxu0 0
        %435 = vmatpush2.bf16.msra.mxu0 0
        %436 = vmatprep.mubr.bf16.mxu0 0
        %437 = vmatmul.mubr.bf16.gmra.mxu0 %v353
        %v438 = vpop.f32.mrf.mxu0
        %v439 = vadd.f32 0.0, %v438
        %v440 = vpop.f32.mrf.mxu0
        %v441 = vpop.f32.mrf.mxu0
        %v442 = vadd.f32 0.0, %v441
        %v443 = vpop.f32.mrf.mxu0
        %444 = vmatprep.mubr.bf16.mxu0 0
        %445 = vmatmul.mubr.bf16.gmra.mxu0 %v356
        %v446 = vpop.f32.mrf.mxu0
        %v447 = vadd.f32 0.0, %v446
        %v448 = vpop.f32.mrf.mxu0
        %v449 = vpop.f32.mrf.mxu0
        %v450 = vadd.f32 0.0, %v449
        %v451 = vpop.f32.mrf.mxu0
        %452 = vmatprep.mubr.bf16.mxu0 0
        %453 = vmatmul.mubr.bf16.gmra.mxu0 %v359
        %v454 = vpop.f32.mrf.mxu0
        %v455 = vadd.f32 0.0, %v454
        %v456 = vpop.f32.mrf.mxu0
        %v457 = vpop.f32.mrf.mxu0
        %v458 = vadd.f32 0.0, %v457
        %v459 = vpop.f32.mrf.mxu0
        %460 = vmatprep.mubr.bf16.mxu0 0
        %461 = vmatmul.mubr.bf16.gmra.mxu0 %v362
        %v462 = vpop.f32.mrf.mxu0
        %v463 = vadd.f32 0.0, %v462
        %v464 = vpop.f32.mrf.mxu0
        %v465 = vpop.f32.mrf.mxu0
        %v466 = vadd.f32 0.0, %v465
        %v467 = vpop.f32.mrf.mxu0
        %468 = vmatprep.mubr.bf16.mxu0 0
        %469 = vmatmul.mubr.bf16.gmra.mxu0 %v365
        %v470 = vpop.f32.mrf.mxu0
        %v471 = vadd.f32 0.0, %v470
        %v472 = vpop.f32.mrf.mxu0
        %v473 = vpop.f32.mrf.mxu0
        %v474 = vadd.f32 0.0, %v473
        %v475 = vpop.f32.mrf.mxu0
        %476 = vmatprep.mubr.bf16.mxu0 0
        %477 = vmatmul.mubr.bf16.gmra.mxu0 %v368
        %v478 = vpop.f32.mrf.mxu0
        %v479 = vadd.f32 0.0, %v478
        %v480 = vpop.f32.mrf.mxu0
        %v481 = vpop.f32.mrf.mxu0
        %v482 = vadd.f32 0.0, %v481
        %v483 = vpop.f32.mrf.mxu0
        %484 = vmatprep.mubr.bf16.mxu0 0
        %485 = vmatmul.mubr.bf16.gmra.mxu0 %v371
        %v486 = vpop.f32.mrf.mxu0
        %v487 = vadd.f32 0.0, %v486
        %v488 = vpop.f32.mrf.mxu0
        %v489 = vpop.f32.mrf.mxu0
        %v490 = vadd.f32 0.0, %v489
        %v491 = vpop.f32.mrf.mxu0
        %492 = vmatprep.mubr.bf16.mxu0 0
        %493 = vmatmul.mubr.bf16.gmra.mxu0 %v374
        %v494 = vpop.f32.mrf.mxu0
        %v495 = vadd.f32 0.0, %v494
        %v496 = vpop.f32.mrf.mxu0
        %v497 = vpop.f32.mrf.mxu0
        %v498 = vadd.f32 0.0, %v497
        %v499 = vpop.f32.mrf.mxu0
        %500 = vmatprep.mubr.bf16.mxu0 0
        %501 = vmatmul.mubr.bf16.gmra.mxu0 %v377
        %v502 = vpop.f32.mrf.mxu0
        %v503 = vadd.f32 0.0, %v502
        %v504 = vpop.f32.mrf.mxu0
        %v505 = vpop.f32.mrf.mxu0
        %v506 = vadd.f32 0.0, %v505
        %v507 = vpop.f32.mrf.mxu0
        %508 = vmatprep.mubr.bf16.mxu0 0
        %509 = vmatmul.mubr.bf16.gmra.mxu0 %v380
        %v510 = vpop.f32.mrf.mxu0
        %v511 = vadd.f32 0.0, %v510
        %v512 = vpop.f32.mrf.mxu0
        %v513 = vpop.f32.mrf.mxu0
        %v514 = vadd.f32 0.0, %v513
        %v515 = vpop.f32.mrf.mxu0
        %516 = vmatprep.mubr.bf16.mxu0 0
        %517 = vmatmul.mubr.bf16.gmra.mxu0 %v383
        %v518 = vpop.f32.mrf.mxu0
        %v519 = vadd.f32 0.0, %v518
        %v520 = vpop.f32.mrf.mxu0
        %v521 = vpop.f32.mrf.mxu0
        %v522 = vadd.f32 0.0, %v521
        %v523 = vpop.f32.mrf.mxu0
        %524 = vmatprep.mubr.bf16.mxu0 0
        %525 = vmatmul.mubr.bf16.gmra.mxu0 %v386
        %v526 = vpop.f32.mrf.mxu0
        %v527 = vadd.f32 0.0, %v526
        %v528 = vpop.f32.mrf.mxu0
        %v529 = vpop.f32.mrf.mxu0
        %v530 = vadd.f32 0.0, %v529
        %v531 = vpop.f32.mrf.mxu0
        %532 = vmatprep.mubr.bf16.mxu0 0
        %533 = vmatmul.mubr.bf16.gmra.mxu0 %v389
        %v534 = vpop.f32.mrf.mxu0
        %v535 = vadd.f32 0.0, %v534
        %v536 = vpop.f32.mrf.mxu0
        %v537 = vpop.f32.mrf.mxu0
        %v538 = vadd.f32 0.0, %v537
        %v539 = vpop.f32.mrf.mxu0
        %540 = vmatprep.mubr.bf16.mxu0 0
        %541 = vmatmul.mubr.bf16.gmra.mxu0 %v392
        %v542 = vpop.f32.mrf.mxu0
        %v543 = vadd.f32 0.0, %v542
        %v544 = vpop.f32.mrf.mxu0
        %v545 = vpop.f32.mrf.mxu0
        %v546 = vadd.f32 0.0, %v545
        %v547 = vpop.f32.mrf.mxu0
        %548 = vmatprep.mubr.bf16.mxu0 0
        %549 = vmatmul.mubr.bf16.gmra.mxu0 %v395
        %v550 = vpop.f32.mrf.mxu0
        %v551 = vadd.f32 0.0, %v550
        %v552 = vpop.f32.mrf.mxu0
        %v553 = vpop.f32.mrf.mxu0
        %v554 = vadd.f32 0.0, %v553
        %v555 = vpop.f32.mrf.mxu0
        %556 = vmatprep.mubr.bf16.mxu0 0
        %557 = vmatmul.mubr.bf16.gmra.mxu0 %v398
        %v558 = vpop.f32.mrf.mxu0
        %v559 = vadd.f32 0.0, %v558
        %v560 = vpop.f32.mrf.mxu0
        %v561 = vpop.f32.mrf.mxu0
        %v562 = vadd.f32 0.0, %v561
        %v563 = vpop.f32.mrf.mxu0
        %564 = vdwg.mxu0
        %v565 = vpack.c.bf16 %v442, %v439
        %v566 = vpack.c.bf16 %v450, %v447
        %v567 = vpack.c.bf16 %v458, %v455
        %v568 = vpack.c.bf16 %v466, %v463
        %v569 = vpack.c.bf16 %v474, %v471
        %v570 = vpack.c.bf16 %v482, %v479
        %v571 = vpack.c.bf16 %v490, %v487
        %v572 = vpack.c.bf16 %v498, %v495
        %v573 = vpack.c.bf16 %v506, %v503
        %v574 = vpack.c.bf16 %v514, %v511
        %v575 = vpack.c.bf16 %v522, %v519
        %v576 = vpack.c.bf16 %v530, %v527
        %v577 = vpack.c.bf16 %v538, %v535
        %v578 = vpack.c.bf16 %v546, %v543
        %v579 = vpack.c.bf16 %v554, %v551
        %v580 = vpack.c.bf16 %v562, %v559
        %v597 = vunpack.c.l.b16 %v565
        %v598 = vunpack.c.h.b16 %v565
        %v599 = vunpack.c.l.b16 %v566
        %v600 = vunpack.c.h.b16 %v566
        %v601 = vunpack.c.l.b16 %v567
        %v602 = vunpack.c.h.b16 %v567
        %v603 = vunpack.c.l.b16 %v568
        %v604 = vunpack.c.h.b16 %v568
        %v605 = vunpack.c.l.b16 %v569
        %v606 = vunpack.c.h.b16 %v569
        %v607 = vunpack.c.l.b16 %v570
        %v608 = vunpack.c.h.b16 %v570
        %v609 = vunpack.c.l.b16 %v571
        %v610 = vunpack.c.h.b16 %v571
        %v611 = vunpack.c.l.b16 %v572
        %v612 = vunpack.c.h.b16 %v572
        %v613 = vunpack.c.l.b16 %v573
        %v614 = vunpack.c.h.b16 %v573
        %v615 = vunpack.c.l.b16 %v574
        %v616 = vunpack.c.h.b16 %v574
        %v617 = vunpack.c.l.b16 %v575
        %v618 = vunpack.c.h.b16 %v575
        %v619 = vunpack.c.l.b16 %v576
        %v620 = vunpack.c.h.b16 %v576
        %v621 = vunpack.c.l.b16 %v577
        %v622 = vunpack.c.h.b16 %v577
        %v623 = vunpack.c.l.b16 %v578
        %v624 = vunpack.c.h.b16 %v578
        %v625 = vunpack.c.l.b16 %v579
        %v626 = vunpack.c.h.b16 %v579
        %v627 = vunpack.c.l.b16 %v580
        %v628 = vunpack.c.h.b16 %v580
        %v629 = vpack.c.b16 %v597, %v597
        %v630 = vpack.c.b16 %v598, %v598
        %v631 = vpack.c.b16 %v599, %v599
        %v632 = vpack.c.b16 %v600, %v600
        %v633 = vpack.c.b16 %v601, %v601
        %v634 = vpack.c.b16 %v602, %v602
        %v635 = vpack.c.b16 %v603, %v603
        %v636 = vpack.c.b16 %v604, %v604
        %v637 = vpack.c.b16 %v605, %v605
        %v638 = vpack.c.b16 %v606, %v606
        %v639 = vpack.c.b16 %v607, %v607
        %v640 = vpack.c.b16 %v608, %v608
        %v641 = vpack.c.b16 %v609, %v609
        %v642 = vpack.c.b16 %v610, %v610
        %v643 = vpack.c.b16 %v611, %v611
        %v644 = vpack.c.b16 %v612, %v612
        %v645 = vpack.c.b16 %v613, %v613
        %v646 = vpack.c.b16 %v614, %v614
        %v647 = vpack.c.b16 %v615, %v615
        %v648 = vpack.c.b16 %v616, %v616
        %v649 = vpack.c.b16 %v617, %v617
        %v650 = vpack.c.b16 %v618, %v618
        %v651 = vpack.c.b16 %v619, %v619
        %v652 = vpack.c.b16 %v620, %v620
        %v653 = vpack.c.b16 %v621, %v621
        %v654 = vpack.c.b16 %v622, %v622
        %v655 = vpack.c.b16 %v623, %v623
        %v656 = vpack.c.b16 %v624, %v624
        %v657 = vpack.c.b16 %v625, %v625
        %v658 = vpack.c.b16 %v626, %v626
        %v659 = vpack.c.b16 %v627, %v627
        %v660 = vpack.c.b16 %v628, %v628
        %693 = vst [vmem:[%s222] sm:$0xf] %v629
        %694 = vst [vmem:[%s222 + $0x4] sm:$0xf] %v630
        %695 = vst [vmem:[%s222 + $0x8] sm:$0xf] %v631
        %696 = vst [vmem:[%s222 + $0xc] sm:$0xf] %v632
        %697 = vst [vmem:[%s222 + $0x10] sm:$0xf] %v633
        %698 = vst [vmem:[%s222 + $0x14] sm:$0xf] %v634
        %699 = vst [vmem:[%s222 + $0x18] sm:$0xf] %v635
        %700 = vst [vmem:[%s222 + $0x1c] sm:$0xf] %v636
        %701 = vst [vmem:[%s222 + $0x20] sm:$0xf] %v637
        %702 = vst [vmem:[%s222 + $0x24] sm:$0xf] %v638
        %703 = vst [vmem:[%s222 + $0x28] sm:$0xf] %v639
        %704 = vst [vmem:[%s222 + $0x2c] sm:$0xf] %v640
        %705 = vst [vmem:[%s222 + $0x30] sm:$0xf] %v641
        %706 = vst [vmem:[%s222 + $0x34] sm:$0xf] %v642
        %707 = vst [vmem:[%s222 + $0x38] sm:$0xf] %v643
        %708 = vst [vmem:[%s222 + $0x3c] sm:$0xf] %v644
        %709 = vst [vmem:[%s222 + $0x40] sm:$0xf] %v645
        %710 = vst [vmem:[%s222 + $0x44] sm:$0xf] %v646
        %711 = vst [vmem:[%s222 + $0x48] sm:$0xf] %v647
        %712 = vst [vmem:[%s222 + $0x4c] sm:$0xf] %v648
        %713 = vst [vmem:[%s222 + $0x50] sm:$0xf] %v649
        %714 = vst [vmem:[%s222 + $0x54] sm:$0xf] %v650
        %715 = vst [vmem:[%s222 + $0x58] sm:$0xf] %v651
        %716 = vst [vmem:[%s222 + $0x5c] sm:$0xf] %v652
        %717 = vst [vmem:[%s222 + $0x60] sm:$0xf] %v653
        %718 = vst [vmem:[%s222 + $0x64] sm:$0xf] %v654
        %719 = vst [vmem:[%s222 + $0x68] sm:$0xf] %v655
        %720 = vst [vmem:[%s222 + $0x6c] sm:$0xf] %v656
        %721 = vst [vmem:[%s222 + $0x70] sm:$0xf] %v657
        %722 = vst [vmem:[%s222 + $0x74] sm:$0xf] %v658
        %723 = vst [vmem:[%s222 + $0x78] sm:$0xf] %v659
        %724 = vst [vmem:[%s222 + $0x7c] sm:$0xf] %v660
        %v725 = vadd.f32 %v439, %v442
        %v726 = vadd.f32 %v725, %v447
        %v727 = vadd.f32 %v726, %v450
        %v728 = vadd.f32 %v727, %v455
        %v729 = vadd.f32 %v728, %v458
        %v730 = vadd.f32 %v729, %v463
        %v731 = vadd.f32 %v730, %v466
        %v732 = vadd.f32 %v731, %v471
        %v733 = vadd.f32 %v732, %v474
        %v734 = vadd.f32 %v733, %v479
        %v735 = vadd.f32 %v734, %v482
        %v736 = vadd.f32 %v735, %v487
        %v737 = vadd.f32 %v736, %v490
        %v738 = vadd.f32 %v737, %v495
        %v739 = vadd.f32 %v738, %v498
        %v740 = vadd.f32 %v739, %v503
        %v741 = vadd.f32 %v740, %v506
        %v742 = vadd.f32 %v741, %v511
        %v743 = vadd.f32 %v742, %v514
        %v744 = vadd.f32 %v743, %v519
        %v745 = vadd.f32 %v744, %v522
        %v746 = vadd.f32 %v745, %v527
        %v747 = vadd.f32 %v746, %v530
        %v748 = vadd.f32 %v747, %v535
        %v749 = vadd.f32 %v748, %v538
        %v750 = vadd.f32 %v749, %v543
        %v751 = vadd.f32 %v750, %v546
        %v752 = vadd.f32 %v751, %v551
        %v753 = vadd.f32 %v752, %v554
        %v754 = vadd.f32 %v753, %v559
        %v755 = vadd.f32 %v754, %v562
        %v756 = vmul.f32 %v439, %v439
        %v757 = vmul.f32 %v442, %v442
        %v758 = vmul.f32 %v447, %v447
        %v759 = vmul.f32 %v450, %v450
        %v760 = vmul.f32 %v455, %v455
        %v761 = vmul.f32 %v458, %v458
        %v762 = vmul.f32 %v463, %v463
        %v763 = vmul.f32 %v466, %v466
        %v764 = vmul.f32 %v471, %v471
        %v765 = vmul.f32 %v474, %v474
        %v766 = vmul.f32 %v479, %v479
        %v767 = vmul.f32 %v482, %v482
        %v768 = vmul.f32 %v487, %v487
        %v769 = vmul.f32 %v490, %v490
        %v770 = vmul.f32 %v495, %v495
        %v771 = vmul.f32 %v498, %v498
        %v772 = vmul.f32 %v503, %v503
        %v773 = vmul.f32 %v506, %v506
        %v774 = vmul.f32 %v511, %v511
        %v775 = vmul.f32 %v514, %v514
        %v776 = vmul.f32 %v519, %v519
        %v777 = vmul.f32 %v522, %v522
        %v778 = vmul.f32 %v527, %v527
        %v779 = vmul.f32 %v530, %v530
        %v780 = vmul.f32 %v535, %v535
        %v781 = vmul.f32 %v538, %v538
        %v782 = vmul.f32 %v543, %v543
        %v783 = vmul.f32 %v546, %v546
        %v784 = vmul.f32 %v551, %v551
        %v785 = vmul.f32 %v554, %v554
        %v786 = vmul.f32 %v559, %v559
        %v787 = vmul.f32 %v562, %v562
        %v788 = vadd.f32 %v756, %v757
        %v789 = vadd.f32 %v788, %v758
        %v790 = vadd.f32 %v789, %v759
        %v791 = vadd.f32 %v790, %v760
        %v792 = vadd.f32 %v791, %v761
        %v793 = vadd.f32 %v792, %v762
        %v794 = vadd.f32 %v793, %v763
        %v795 = vadd.f32 %v794, %v764
        %v796 = vadd.f32 %v795, %v765
        %v797 = vadd.f32 %v796, %v766
        %v798 = vadd.f32 %v797, %v767
        %v799 = vadd.f32 %v798, %v768
        %v800 = vadd.f32 %v799, %v769
        %v801 = vadd.f32 %v800, %v770
        %v802 = vadd.f32 %v801, %v771
        %v803 = vadd.f32 %v802, %v772
        %v804 = vadd.f32 %v803, %v773
        %v805 = vadd.f32 %v804, %v774
        %v806 = vadd.f32 %v805, %v775
        %v807 = vadd.f32 %v806, %v776
        %v808 = vadd.f32 %v807, %v777
        %v809 = vadd.f32 %v808, %v778
        %v810 = vadd.f32 %v809, %v779
        %v811 = vadd.f32 %v810, %v780
        %v812 = vadd.f32 %v811, %v781
        %v813 = vadd.f32 %v812, %v782
        %v814 = vadd.f32 %v813, %v783
        %v815 = vadd.f32 %v814, %v784
        %v816 = vadd.f32 %v815, %v785
        %v817 = vadd.f32 %v816, %v786
        %v818 = vadd.f32 %v817, %v787
        %819 = vst [vmem:[%s229] sm:$0xff] %v755
        %s820 = scalar_lea.vmem %s229, 8 [#allocation4]
        %821 = vst [vmem:[%s820] sm:$0xff] %v818
        %s822 = sand.u32 %s120, 1
        %s823 = scalar_lea.sflag [#allocation3], %s822
        %s824 = sand.u32 %s120, 1
        %s825 = smul.addr %s824, 128
        %s826 = scalar_lea.vmem [#allocation2], %s825
        %s827 = sand.u32 %s146, 1
        %s828 = scalar_lea.sflag [#allocation5], %s827
        %s829 = sand.u32 %s146, 1
        %s830 = smul.addr %s829, 16
        %s831 = scalar_lea.vmem [#allocation4], %s830
        // Predicated region
        $region37: #{tpu_custom_call.1} parent=35 // pred_check
          %p832 = pneg %p130
        $region38: #{tpu_custom_call.1} parent=35 // pred_check_branch
          %834 = sbr.rel (%p832) target = $region40
        $region39: #{tpu_custom_call.1} parent=35 // pred_region
          %s835 = smul.u32 32, %s23
          %s837 = ssub.s32 2048, 2048
          %838 = vsyncadd %s823, %s837
          %s839 = smul.addr %s835, 64
          %s840 = scalar_lea.hbm %s4, %s839
          %s841 = sshll.u32 %s826, 4
          %s842 = int_to_ptr.vmem [resolvable:$true] %s841
          %847 = dma.vmem_to_hbm [thread:$0]  %s842, 2048, %s840, %s823, 64, 64, 4
        $region40: #{tpu_custom_call.1} parent=35 // pred_fallthru
          _
        // Predicated region
        $region41: #{tpu_custom_call.1} parent=35 // pred_check
          %p848 = pneg %p156
        $region42: #{tpu_custom_call.1} parent=35 // pred_check_branch
          %850 = sbr.rel (%p848) target = $region44
        $region43: #{tpu_custom_call.1} parent=35 // pred_region
          %s852 = ssub.s32 256, 256
          %853 = vsyncadd %s828, %s852
          %s854 = smul.addr %s23, 2
          %s855 = smul.addr %s854, 128
          %s856 = scalar_lea.hbm %s5, %s855
          %s857 = sshll.u32 %s831, 4
          %s858 = int_to_ptr.vmem [resolvable:$true] %s857
          %863 = dma.vmem_to_hbm [thread:$0]  %s858, 256, %s856, %s828, 128, 128, 8
        $region44: #{tpu_custom_call.1} parent=35 // pred_fallthru
          _
      $region36: #{tpu_custom_call.1} parent=5 // pred_fallthru
        _
      %p864 = scmp.le.s32.totalorder 2, %s18
      // Predicated region
      $region45: #{tpu_custom_call.1} parent=5 // pred_check
        %p865 = pneg %p864
      $region46: #{tpu_custom_call.1} parent=5 // pred_check_branch
        %867 = sbr.rel (%p865) target = $region48
      $region47: #{tpu_custom_call.1} parent=5 // pred_region
        %s868 = ssub.s32 %s18, 2
        // Predicated region
        $region49: #{tpu_custom_call.1} parent=47 // pred_check
          %p869 = pneg %p136
        $region50: #{tpu_custom_call.1} parent=47 // pred_check_branch
          %871 = sbr.rel (%p869) target = $region52
        $region51: #{tpu_custom_call.1} parent=47 // pred_region
          %s872 = sand.u32 %s121, 1
          %s873 = scalar_lea.sflag [#allocation3], %s872
          %s874 = sand.u32 %s121, 1
          %s875 = smul.addr %s874, 128
          %s876 = scalar_lea.vmem [#allocation2], %s875
          %877 = dma.done %s873, 2048
        $region52: #{tpu_custom_call.1} parent=47 // pred_fallthru
          _
        // Predicated region
        $region53: #{tpu_custom_call.1} parent=47 // pred_check
          %p878 = pneg %p162
        $region54: #{tpu_custom_call.1} parent=47 // pred_check_branch
          %880 = sbr.rel (%p878) target = $region56
        $region55: #{tpu_custom_call.1} parent=47 // pred_region
          %s881 = sand.u32 %s147, 1
          %s882 = scalar_lea.sflag [#allocation5], %s881
          %s883 = sand.u32 %s147, 1
          %s884 = smul.addr %s883, 16
          %s885 = scalar_lea.vmem [#allocation4], %s884
          %886 = dma.done %s882, 256
        $region56: #{tpu_custom_call.1} parent=47 // pred_fallthru
          _
      $region48: #{tpu_custom_call.1} parent=5 // pred_fallthru
        _
    $region6: #{tpu_custom_call.1} parent=1 // loop_footer
      %s22 = sadd.s32 1, %s18
    $region7: #{tpu_custom_call.1} parent=1 // loop_footer_branch
      %17 = sbr.rel target = $region3
    $region8: #{tpu_custom_call.1} parent=1 // loop_exit
      _
    %887 = vsyncpa [#allocation3], 1
    %s888 = scalar_lea.sflag [#allocation3], 1
    %889 = vsyncpa %s888, 1
    %890 = vsyncpa [#allocation5], 1
    %s891 = scalar_lea.sflag [#allocation5], 1
    %892 = vsyncpa %s891, 1

</llo_original>
